<compile_context>
chip_gen: v7x
topology: tpu7x:2x2x1
jax: 0.10.0
libtpu: 0.0.40
codegen_flags: <defaults>
</compile_context>

<pallas_src>
import functools

import jax
import jax.numpy as jnp
from jax.experimental import pallas as pl
from jax.experimental.pallas import tpu as pltpu


def _mse_adaptor_kernel(x_ref, w_ref, b_ref, soft_ref, out_ref, acc_ref, *,
                        inv_count, tm, n_inner, hw, needs_mask):
    j = pl.program_id(2)

    @pl.when(j == 0)
    def _():
        acc_ref[...] = jnp.zeros_like(acc_ref)

    # 1x1 conv == channel matmul on the MXU: (T,S) @ (S,tm) -> (T,tm), f32 accumulate.
    y = jnp.dot(w_ref[...], x_ref[...], preferred_element_type=jnp.float32)
    y = y + b_ref[...]                                   # (T,tm) + (T,1) lane-broadcast
    d = y - soft_ref[...].astype(jnp.float32)

    if needs_mask:
        # Zero the padded spatial columns of the ragged last tile.
        base = (pl.program_id(1) * n_inner + j) * tm
        col = base + jax.lax.broadcasted_iota(jnp.int32, (1, tm), 1)
        d = jnp.where(col < hw, d, 0.0)

    # Sublane-only reduce per step; keep a lane-wide f32 partial sum.
    acc_ref[...] += jnp.sum(d * d, axis=0, keepdims=True)

    @pl.when(j == pl.num_programs(2) - 1)
    def _():
        # One cross-lane reduce + normalization per (batch, parallel-chunk).
        out_ref[...] = jnp.sum(acc_ref[...], keepdims=True) * inv_count


def criterion_mse_pallas(preds_nchw, soft_nchw, weight_tskk, bias_t, *, tm=2048):
    """mean((Conv1x1(preds) - soft)^2).  preds: (N,S,H,W), soft: (N,T,H,W),
    weight: (T,S,1,1), bias: (T,).  Inputs are consumed in their native dtype
    (bf16 features halve HBM traffic); all accumulation is f32."""
    N, S, H, W = preds_nchw.shape
    Ns, T, Hs, Ws = soft_nchw.shape
    assert (Ns, Hs, Ws) == (N, H, W)
    HW = H * W

    # Free reshapes -- stay in NCHW, no transpose pass over HBM.
    x = preds_nchw.reshape(N, S, HW)
    s = soft_nchw.reshape(N, T, HW)
    w = weight_tskk.reshape(T, S).astype(x.dtype)        # tiny; feed MXU in x's dtype
    b = bias_t.reshape(T, 1).astype(jnp.float32)

    # Spatial tile (lane axis): big, 128-aligned, clamped to the padded spatial extent.
    tm = max(128, (min(tm, pl.cdiv(HW, 128) * 128) // 128) * 128)
    n_sp = pl.cdiv(HW, tm)                 # spatial tiles per batch image
    needs_mask = (n_sp * tm != HW)
    P = 2 if (n_sp % 2 == 0) else 1        # extra parallel split (uses both v7x TCs even at N=1)
    n_inner = n_sp // P

    inv_count = 1.0 / float(N * T * HW)
    kernel = functools.partial(_mse_adaptor_kernel, inv_count=inv_count, tm=tm,
                               n_inner=n_inner, hw=HW, needs_mask=needs_mask)

    partials = pl.pallas_call(
        kernel,
        out_shape=jax.ShapeDtypeStruct((N, P, 1, 1), jnp.float32),
        grid_spec=pltpu.PrefetchScalarGridSpec(
            num_scalar_prefetch=0,
            grid=(N, P, n_inner),
            in_specs=[
                pl.BlockSpec((None, S, tm), lambda n, p, j: (n, 0, p * n_inner + j)),
                pl.BlockSpec((T, S), lambda n, p, j: (0, 0)),    # weight, resident
                pl.BlockSpec((T, 1), lambda n, p, j: (0, 0)),    # bias, resident
                pl.BlockSpec((None, T, tm), lambda n, p, j: (n, 0, p * n_inner + j)),
            ],
            out_specs=pl.BlockSpec((None, None, 1, 1), lambda n, p, j: (n, p, 0, 0)),
            scratch_shapes=[pltpu.VMEM((1, tm), jnp.float32)],
        ),
        compiler_params=pltpu.CompilerParams(
            dimension_semantics=("parallel", "parallel", "arbitrary"),
        ),
    )(x, w, b, s)
    return jnp.sum(partials)


if __name__ == "__main__":
    # Module defaults: S_channel=128, T_channle=256; small batch/spatial for the demo.
    N, S, T, H, W = 2, 128, 256, 16, 16

    key = jax.random.PRNGKey(0)
    k1, k2, k3, k4 = jax.random.split(key, 4)

    # Distillation features typically arrive as bf16 -> bandwidth-optimal kernel path.
    preds = jax.random.normal(k1, (N, S, H, W), dtype=jnp.float32).astype(jnp.bfloat16)
    soft = jax.random.normal(k2, (N, T, H, W), dtype=jnp.float32).astype(jnp.bfloat16)

    # Conv2d(S, T, kernel_size=1) parameters (PyTorch default init bounds), kept in f32.
    bound = 1.0 / (S ** 0.5)
    weight = jax.random.uniform(k3, (T, S, 1, 1), minval=-bound, maxval=bound,
                                dtype=jnp.float32)
    bias = jax.random.uniform(k4, (T,), minval=-bound, maxval=bound, dtype=jnp.float32)

    loss = criterion_mse_pallas(preds, soft, weight, bias)
    jax.block_until_ready(loss)

    # Pure-JAX f32 reference on the same operands the kernel consumes
    # (features are bf16-valued; the MXU sees the weight rounded to bf16).
    w_ref = weight.reshape(T, S).astype(jnp.bfloat16).astype(jnp.float32)
    xr = jnp.transpose(preds.astype(jnp.float32), (0, 2, 3, 1)).reshape(-1, S)
    sr = jnp.transpose(soft.astype(jnp.float32), (0, 2, 3, 1)).reshape(-1, T)
    ref = jnp.mean((xr @ w_ref.T + bias - sr) ** 2)
    assert jnp.allclose(loss, ref, rtol=1e-3, atol=1e-5), (loss, ref)

    print("KERNEL_OK")
</pallas_src>

<mosaic_0001>
module attributes {stable_mosaic.version = 11 : i64} {
  func.func @_mse_adaptor_kernel(%arg0: i32, %arg1: i32, %arg2: i32, %arg3: memref<1x128x256xbf16, #tpu.memory_space<vmem>>, %arg4: memref<256x128xbf16, #tpu.memory_space<vmem>>, %arg5: memref<256x1xf32, #tpu.memory_space<vmem>>, %arg6: memref<1x256x256xbf16, #tpu.memory_space<vmem>>, %arg7: memref<1x1x1x1xf32, #tpu.memory_space<vmem>>, %arg8: memref<1x256xf32, #tpu.memory_space<vmem>>) attributes {dimension_semantics = [#tpu.dimension_semantics<parallel>, #tpu.dimension_semantics<parallel>, #tpu.dimension_semantics<arbitrary>], iteration_bounds = array<i64: 2, 1, 1>, scalar_prefetch = 0 : i64, scratch_operands = 1 : i64, tpu.core_type = #tpu.core_type<tc>, window_params = [{transform_indices = @transform_0, window_bounds = array<i64: 1, 128, 256>}, {pipeline_mode = #tpu.pipeline_mode<synchronous>, transform_indices = @transform_1, window_bounds = array<i64: 256, 128>}, {pipeline_mode = #tpu.pipeline_mode<synchronous>, transform_indices = @transform_2, window_bounds = array<i64: 256, 1>}, {transform_indices = @transform_3, window_bounds = array<i64: 1, 256, 256>}, {transform_indices = @transform_4, window_bounds = array<i64: 1, 1, 1, 1>}]} {
    %c0_i32 = arith.constant 0 : i32
    %0 = arith.cmpi eq, %arg2, %c0_i32 : i32
    %1 = arith.extui %0 : i1 to i32
    %c0_i32_0 = arith.constant 0 : i32
    %2 = arith.cmpi ne, %1, %c0_i32_0 : i32
    scf.if %2 {
      %cst_17 = arith.constant 0.000000e+00 : f32
      %23 = vector.broadcast %cst_17 : f32 to vector<1x256xf32>
      %c0_18 = arith.constant 0 : index
      %c0_19 = arith.constant 0 : index
      %24 = vector.load %arg8[%c0_18, %c0_19] : memref<1x256xf32, #tpu.memory_space<vmem>>, vector<1x256xf32>
      tpu.vector_store %arg8[%c0_18, %c0_19], %23 {strides = array<i32>} : memref<1x256xf32, #tpu.memory_space<vmem>>, vector<1x256xf32>,
    } else {
    }
    %c0 = arith.constant 0 : index
    %c0_1 = arith.constant 0 : index
    %3 = vector.load %arg4[%c0, %c0_1] : memref<256x128xbf16, #tpu.memory_space<vmem>>, vector<256x128xbf16>
    %c0_2 = arith.constant 0 : index
    %c0_3 = arith.constant 0 : index
    %c0_4 = arith.constant 0 : index
    %4 = vector.load %arg3[%c0_2, %c0_3, %c0_4] : memref<1x128x256xbf16, #tpu.memory_space<vmem>>, vector<1x128x256xbf16>
    %5 = vector.shape_cast %4 : vector<1x128x256xbf16> to vector<128x256xbf16>
    %cst = arith.constant dense<0.000000e+00> : vector<256x256xf32>
    %6 = tpu.matmul %3, %5, %cst {dimension_numbers = #tpu.dot_dimension_numbers<[1], [0], [0], [1], [0, 0, 1, 1], [], []>} : vector<256x128xbf16>, vector<128x256xbf16>, vector<256x256xf32> -> vector<256x256xf32>
    %c0_5 = arith.constant 0 : index
    %c0_6 = arith.constant 0 : index
    %7 = vector.load %arg5[%c0_5, %c0_6] : memref<256x1xf32, #tpu.memory_space<vmem>>, vector<256x1xf32>
    %8 = vector.broadcast %7 : vector<256x1xf32> to vector<256x256xf32>
    %9 = arith.addf %6, %8 : vector<256x256xf32>
    %c0_7 = arith.constant 0 : index
    %c0_8 = arith.constant 0 : index
    %c0_9 = arith.constant 0 : index
    %10 = vector.load %arg6[%c0_7, %c0_8, %c0_9] : memref<1x256x256xbf16, #tpu.memory_space<vmem>>, vector<1x256x256xbf16>
    %11 = vector.shape_cast %10 : vector<1x256x256xbf16> to vector<256x256xbf16>
    %12 = arith.extf %11 : vector<256x256xbf16> to vector<256x256xf32>
    %13 = arith.subf %9, %12 : vector<256x256xf32>
    %c0_10 = arith.constant 0 : index
    %c0_11 = arith.constant 0 : index
    %14 = vector.load %arg8[%c0_10, %c0_11] : memref<1x256xf32, #tpu.memory_space<vmem>>, vector<1x256xf32>
    %15 = arith.mulf %13, %13 : vector<256x256xf32>
    %cst_12 = arith.constant dense<0.000000e+00> : vector<256xf32>
    %16 = vector.multi_reduction <add>, %15, %cst_12 [0] : vector<256x256xf32> to vector<256xf32>
    %17 = vector.shape_cast %16 : vector<256xf32> to vector<1x256xf32>
    %18 = arith.addf %14, %17 : vector<1x256xf32>
    %c0_13 = arith.constant 0 : index
    %c0_14 = arith.constant 0 : index
    %19 = vector.load %arg8[%c0_13, %c0_14] : memref<1x256xf32, #tpu.memory_space<vmem>>, vector<1x256xf32>
    tpu.vector_store %arg8[%c0_13, %c0_14], %18 {strides = array<i32>} : memref<1x256xf32, #tpu.memory_space<vmem>>, vector<1x256xf32>,
    %c0_i32_15 = arith.constant 0 : i32
    %20 = arith.cmpi eq, %arg2, %c0_i32_15 : i32
    %21 = arith.extui %20 : i1 to i32
    %c0_i32_16 = arith.constant 0 : i32
    %22 = arith.cmpi ne, %21, %c0_i32_16 : i32
    scf.if %22 {
      %c0_17 = arith.constant 0 : index
      %c0_18 = arith.constant 0 : index
      %23 = vector.load %arg8[%c0_17, %c0_18] : memref<1x256xf32, #tpu.memory_space<vmem>>, vector<1x256xf32>
      %24 = vector.shape_cast %23 : vector<1x256xf32> to vector<1x1x256xf32>
      %cst_19 = arith.constant dense<0.000000e+00> : vector<1xf32>
      %25 = vector.multi_reduction <add>, %24, %cst_19 [1, 2] : vector<1x1x256xf32> to vector<1xf32>
      %26 = vector.shape_cast %25 : vector<1xf32> to vector<1x1x1xf32>
      %27 = vector.extract %26[0, 0, 0] : f32 from vector<1x1x1xf32>
      %28 = vector.broadcast %27 : f32 to vector<1x1xf32>
      %cst_20 = arith.constant 7.62939453E-6 : f32
      %29 = vector.broadcast %cst_20 : f32 to vector<1x1xf32>
      %30 = arith.mulf %28, %29 : vector<1x1xf32>
      %c0_21 = arith.constant 0 : index
      %c0_22 = arith.constant 0 : index
      %c0_23 = arith.constant 0 : index
      %c0_24 = arith.constant 0 : index
      %31 = vector.load %arg7[%c0_21, %c0_22, %c0_23, %c0_24] : memref<1x1x1x1xf32, #tpu.memory_space<vmem>>, vector<1x1x1x1xf32>
      %32 = vector.shape_cast %31 : vector<1x1x1x1xf32> to vector<1x1xf32>
      %33 = vector.shape_cast %30 : vector<1x1xf32> to vector<1x1x1x1xf32>
      tpu.vector_store %arg7[%c0_21, %c0_22, %c0_23, %c0_24], %33 {strides = array<i32>} : memref<1x1x1x1xf32, #tpu.memory_space<vmem>>, vector<1x1x1x1xf32>,
    } else {
    }
    return
  }
  func.func @transform_0(%arg0: i32, %arg1: i32, %arg2: i32) -> (i32, i32, i32) {
    %c1_i32 = arith.constant 1 : i32
    %0 = arith.muli %arg1, %c1_i32 : i32
    %1 = arith.addi %0, %arg2 : i32
    %c0_i32 = arith.constant 0 : i32
    %c0_i32_0 = arith.constant 0 : i32
    return %arg0, %c0_i32, %1 : i32, i32, i32
  }
  func.func @transform_1(%arg0: i32, %arg1: i32, %arg2: i32) -> (i32, i32) {
    %c0_i32 = arith.constant 0 : i32
    %c0_i32_0 = arith.constant 0 : i32
    %c0_i32_1 = arith.constant 0 : i32
    return %c0_i32, %c0_i32_0 : i32, i32
  }
  func.func @transform_2(%arg0: i32, %arg1: i32, %arg2: i32) -> (i32, i32) {
    %c0_i32 = arith.constant 0 : i32
    %c0_i32_0 = arith.constant 0 : i32
    %c0_i32_1 = arith.constant 0 : i32
    return %c0_i32, %c0_i32_0 : i32, i32
  }
  func.func @transform_3(%arg0: i32, %arg1: i32, %arg2: i32) -> (i32, i32, i32) {
    %c1_i32 = arith.constant 1 : i32
    %0 = arith.muli %arg1, %c1_i32 : i32
    %1 = arith.addi %0, %arg2 : i32
    %c0_i32 = arith.constant 0 : i32
    %c0_i32_0 = arith.constant 0 : i32
    return %arg0, %c0_i32, %1 : i32, i32, i32
  }
  func.func @transform_4(%arg0: i32, %arg1: i32, %arg2: i32) -> (i32, i32, i32, i32) {
    %c0_i32 = arith.constant 0 : i32
    %c0_i32_0 = arith.constant 0 : i32
    %c0_i32_1 = arith.constant 0 : i32
    return %arg0, %arg1, %c0_i32, %c0_i32_0 : i32, i32, i32, i32
  }
}

</mosaic_0001>

<llo_original>
// kernel: tpu_custom_call.1
$region0: #{tpu_custom_call.1}
  #allocation0 [shape = 'u32[]', space=smem, size = 0x4, offset = 0x4, fixed_abs, tag = 'smem constant byte address 0x4 - core index']
  #allocation1 [shape = 'u32[144,128]{1,0:T(1,128)}', space=vmem, size = 0x12000, scoped, tag = 'internal scratch']
  #allocation2 [shape = 'f32[1,256]{1,0:T(1,128)}', space=vmem, size = 0x400, scoped, tag = 'scratch operand']
  %s0 = inlined_call_operand.vmem [shape: bf16[2,128,256], index: 0, kind: input, shape index: {}]
  %s1 = inlined_call_operand.hbm [shape: bf16[256,128], index: 1, kind: input, shape index: {}]
  %s2 = inlined_call_operand.vmem [shape: f32[256,1], index: 2, kind: input, shape index: {}]
  %s3 = inlined_call_operand.hbm [shape: bf16[2,256,256], index: 3, kind: input, shape index: {}]
  %s4 = inlined_call_operand.vmem [shape: f32[2,1,1,1], index: 4, kind: output, shape index: {}]
  %s5 = sld [smem:[#allocation0]]
  $region65: #{tpu_custom_call.1} parent=0
    _
  %s7 = ssub.s32 1, %s5
  %s8 = scalar_select 0, %s7, %s5
  $region1: #{tpu_custom_call.1} parent=0
    #allocation3 [shape = 'u8[65536]{0}', space=vmem, size = 0x10000, scoped, tag = 'input window, operand 1, single buffered']
    #allocation4 [shape = 's32[2]{0}', space=sflag, size = 0x8, scoped, tag = 'scoped memory for tpu_custom_call.1']
    #allocation5 [shape = 'u8[262144]{0}', space=vmem, size = 0x40000, scoped, tag = 'input window, operand 3']
    #allocation6 [shape = 's32[2]{0}', space=sflag, size = 0x8, scoped, tag = 'scoped memory for tpu_custom_call.1']
    %9 = vsyncpa [#allocation4], 0
    %10 = vsyncpa [#allocation6], 0
    %s11 = scalar_lea.sflag [#allocation6], 1
    %12 = vsyncpa %s11, 0
    loop: start=0, step=1, limit=4
    $region2: #{tpu_custom_call.1} parent=1 // loop_pre_header
      _
    $region3: #{tpu_custom_call.1} parent=1 // loop_header
      %s14 = sphi 0, %s18
      %p15 = scmp.ge.s32.totalorder %s14, 4
      %s21 = sphi 0, %s40
      %s22 = sphi 0, %s36
      %s23 = sphi 0, %s32
      %s24 = sphi 0, %s21
      %s25 = sphi 0, %s22
      %s26 = sphi 0, %s23
      %s27 = sphi 0, %s24
      %s28 = sphi 0, %s25
      %s29 = sphi 0, %s26
      %s47 = sphi 0, %s49
      %s50 = sphi 0, %s47
      %s51 = sphi 0, %s50
      %s67 = sphi 0, %s51
      %s71 = sphi 0, %s71
      %s73 = sphi 0, %s71
      %s74 = sphi 0, %s73
      %s88 = sphi 0, %s74
      %s92 = sphi 0, %s92
      %s94 = sphi 0, %s92
      %s95 = sphi 0, %s94
      %s109 = sphi 0, %s95
      %s119 = sphi 0, %s121
      %s122 = sphi 0, %s119
      %s123 = sphi 0, %s122
      %s139 = sphi 0, %s123
      %s147 = sphi 0, %s149
      %s150 = sphi 0, %s147
      %s151 = sphi 0, %s150
      %s167 = sphi 0, %s151
    $region4: #{tpu_custom_call.1} parent=1 // loop_header_branch
      %17 = sbr.rel (%p15) target = $region8
    $region5: #{tpu_custom_call.1} parent=1 // loop_body
      %s19 = ssub.s32 %s14, 1
      %s20 = ssub.s32 %s14, 2
      %s30 = sadd.s32 1, %s23
      %p31 = scmp.ge.s32.totalorder %s30, 1
      %s32 = scalar_select %p31, 0, %s30
      %s33 = sadd.s32 1, %s22
      %s34 = scalar_select %p31, %s33, %s22
      %p35 = scmp.ge.s32.totalorder %s34, 1
      %s36 = scalar_select %p35, 0, %s34
      %s37 = sadd.s32 1, %s21
      %s38 = scalar_select %p35, %s37, %s21
      %p39 = scmp.ge.s32.totalorder %s38, 2
      %s40 = scalar_select %p39, 0, %s38
      %s41 = sadd.s32 %s22, %s23
      %s42 = sadd.s32 %s36, %s32
      %s43 = ssub.s32 %s21, %s40
      %s44 = ssub.s32 %s41, %s42
      %s45 = sor.u32 %s43, %s44
      %p46 = scmp.eq.s32.totalorder %s45, 0
      %s48 = sadd.s32 %s47, 1
      %s49 = scalar_select %p46, %s47, %s48
      %p52 = pneg %p46
      %p53 = scmp.eq.s32.totalorder %s14, 1
      %p54 = por %p52, %p53
      %p55 = scmp.ne.s32.totalorder %s47, %s50
      %p56 = scmp.eq.s32.totalorder %s14, 0
      %p57 = por %p55, %p56
      %p58 = scmp.ne.s32.totalorder %s47, %s50
      %p59 = scmp.eq.s32.totalorder %s19, 1
      %p60 = por %p58, %p59
      %p61 = scmp.ne.s32.totalorder %s50, %s51
      %p62 = scmp.eq.s32.totalorder %s19, 0
      %p63 = por %p61, %p62
      %p64 = scmp.ne.s32.totalorder %s50, %s51
      %p65 = scmp.eq.s32.totalorder %s20, 1
      %p66 = por %p64, %p65
      %p68 = scmp.ne.s32.totalorder %s51, %s67
      %p69 = scmp.eq.s32.totalorder %s20, 0
      %p70 = por %p68, %p69
      %s72 = sadd.s32 %s71, 1
      %p75 = scmp.eq.s32.totalorder %s14, 1
      %p76 = scmp.ne.s32.totalorder %s71, %s73
      %p77 = scmp.eq.s32.totalorder %s14, 0
      %p78 = por %p76, %p77
      %p79 = scmp.ne.s32.totalorder %s71, %s73
      %p80 = scmp.eq.s32.totalorder %s19, 1
      %p81 = por %p79, %p80
      %p82 = scmp.ne.s32.totalorder %s73, %s74
      %p83 = scmp.eq.s32.totalorder %s19, 0
      %p84 = por %p82, %p83
      %p85 = scmp.ne.s32.totalorder %s73, %s74
      %p86 = scmp.eq.s32.totalorder %s20, 1
      %p87 = por %p85, %p86
      %p89 = scmp.ne.s32.totalorder %s74, %s88
      %p90 = scmp.eq.s32.totalorder %s20, 0
      %p91 = por %p89, %p90
      %s93 = sadd.s32 %s92, 1
      %p96 = scmp.eq.s32.totalorder %s14, 1
      %p97 = scmp.ne.s32.totalorder %s92, %s94
      %p98 = scmp.eq.s32.totalorder %s14, 0
      %p99 = por %p97, %p98
      %p100 = scmp.ne.s32.totalorder %s92, %s94
      %p101 = scmp.eq.s32.totalorder %s19, 1
      %p102 = por %p100, %p101
      %p103 = scmp.ne.s32.totalorder %s94, %s95
      %p104 = scmp.eq.s32.totalorder %s19, 0
      %p105 = por %p103, %p104
      %p106 = scmp.ne.s32.totalorder %s94, %s95
      %p107 = scmp.eq.s32.totalorder %s20, 1
      %p108 = por %p106, %p107
      %p110 = scmp.ne.s32.totalorder %s95, %s109
      %p111 = scmp.eq.s32.totalorder %s20, 0
      %p112 = por %p110, %p111
      %s113 = sadd.s32 %s22, %s23
      %s114 = sadd.s32 %s36, %s32
      %s115 = ssub.s32 %s21, %s40
      %s116 = ssub.s32 %s113, %s114
      %s117 = sor.u32 %s115, %s116
      %p118 = scmp.eq.s32.totalorder %s117, 0
      %s120 = sadd.s32 %s119, 1
      %s121 = scalar_select %p118, %s119, %s120
      %p124 = pneg %p118
      %p125 = scmp.eq.s32.totalorder %s14, 1
      %p126 = por %p124, %p125
      %p127 = scmp.ne.s32.totalorder %s119, %s122
      %p128 = scmp.eq.s32.totalorder %s14, 0
      %p129 = por %p127, %p128
      %p130 = scmp.ne.s32.totalorder %s119, %s122
      %p131 = scmp.eq.s32.totalorder %s19, 1
      %p132 = por %p130, %p131
      %p133 = scmp.ne.s32.totalorder %s122, %s123
      %p134 = scmp.eq.s32.totalorder %s19, 0
      %p135 = por %p133, %p134
      %p136 = scmp.ne.s32.totalorder %s122, %s123
      %p137 = scmp.eq.s32.totalorder %s20, 1
      %p138 = por %p136, %p137
      %p140 = scmp.ne.s32.totalorder %s123, %s139
      %p141 = scmp.eq.s32.totalorder %s20, 0
      %p142 = por %p140, %p141
      %s143 = ssub.s32 %s21, %s40
      %s144 = ssub.s32 %s22, %s36
      %s145 = sor.u32 %s143, %s144
      %p146 = scmp.eq.s32.totalorder %s145, 0
      %s148 = sadd.s32 %s147, 1
      %s149 = scalar_select %p146, %s147, %s148
      %p152 = pneg %p146
      %p153 = scmp.eq.s32.totalorder %s14, 1
      %p154 = por %p152, %p153
      %p155 = scmp.ne.s32.totalorder %s147, %s150
      %p156 = scmp.eq.s32.totalorder %s14, 0
      %p157 = por %p155, %p156
      %p158 = scmp.ne.s32.totalorder %s147, %s150
      %p159 = scmp.eq.s32.totalorder %s19, 1
      %p160 = por %p158, %p159
      %p161 = scmp.ne.s32.totalorder %s150, %s151
      %p162 = scmp.eq.s32.totalorder %s19, 0
      %p163 = por %p161, %p162
      %p164 = scmp.ne.s32.totalorder %s150, %s151
      %p165 = scmp.eq.s32.totalorder %s20, 1
      %p166 = por %p164, %p165
      %p168 = scmp.ne.s32.totalorder %s151, %s167
      %p169 = scmp.eq.s32.totalorder %s20, 0
      %p170 = por %p168, %p169
      %p171 = scmp.le.s32.totalorder 1, %s14
      %p172 = scmp.lt.s32.totalorder %s14, 3
      %p173 = pnand %p171, %p172
      %p174 = pneg %p173
      // Predicated region
      $region9: #{tpu_custom_call.1} parent=5 // pred_check
        _
      $region10: #{tpu_custom_call.1} parent=5 // pred_check_branch
        %176 = sbr.rel (%p173) target = $region12
      $region11: #{tpu_custom_call.1} parent=5 // pred_region
        %s177 = ssub.s32 %s14, 1
        // Predicated region
        $region13: #{tpu_custom_call.1} parent=11 // pred_check
          %p178 = pneg %p84
        $region14: #{tpu_custom_call.1} parent=11 // pred_check_branch
          %180 = sbr.rel (%p178) target = $region16
        $region15: #{tpu_custom_call.1} parent=11 // pred_region
          %s182 = ssub.s32 2048, 2048
          %183 = vsyncadd [#allocation4], %s182
          %s184 = sshll.u32 [#allocation3], 4
          %s185 = int_to_ptr.vmem [resolvable:$true] %s184
          %190 = dma.hbm_to_vmem [thread:$0]  %s1, 2048, %s185, [#allocation4], 64, 64, 4
        $region16: #{tpu_custom_call.1} parent=11 // pred_fallthru
          _
        // Predicated region
        $region17: #{tpu_custom_call.1} parent=11 // pred_check
          %p191 = pneg %p105
        $region18: #{tpu_custom_call.1} parent=11 // pred_check_branch
          %193 = sbr.rel (%p191) target = $region20
        $region19: #{tpu_custom_call.1} parent=11 // pred_region
          _
        $region20: #{tpu_custom_call.1} parent=11 // pred_fallthru
          _
      $region12: #{tpu_custom_call.1} parent=5 // pred_fallthru
        _
      %p194 = scmp.lt.s32.totalorder %s14, 2
      // Predicated region
      $region21: #{tpu_custom_call.1} parent=5 // pred_check
        %p195 = pneg %p194
      $region22: #{tpu_custom_call.1} parent=5 // pred_check_branch
        %197 = sbr.rel (%p195) target = $region24
      $region23: #{tpu_custom_call.1} parent=5 // pred_region
        // Predicated region
        $region25: #{tpu_custom_call.1} parent=23 // pred_check
          %p198 = pneg %p57
        $region26: #{tpu_custom_call.1} parent=23 // pred_check_branch
          %200 = sbr.rel (%p198) target = $region28
        $region27: #{tpu_custom_call.1} parent=23 // pred_region
          %s201 = sadd.s32 %s22, %s23
          %s202 = smul.u32 2, %s201
          %p203 = scmp.lt.s32.totalorder %s21, 1
          %s204 = scalar_select %p203, %s21, 1
          %p205 = scmp.lt.s32.totalorder %s202, 1
          %s206 = scalar_select %p205, %s202, 1
          %s207 = smul.addr %s204, 32
          %s208 = sadd.s32 %s206, %s207
          %s209 = smul.addr %s208, 4
          %s210 = scalar_lea.vmem %s0, %s209
          %s211 = sadd.s32 %s22, %s23
          %s212 = smul.u32 2, %s211
        $region28: #{tpu_custom_call.1} parent=23 // pred_fallthru
          _
        // Predicated region
        $region29: #{tpu_custom_call.1} parent=23 // pred_check
          %p213 = pneg %p129
        $region30: #{tpu_custom_call.1} parent=23 // pred_check_branch
          %215 = sbr.rel (%p213) target = $region32
        $region31: #{tpu_custom_call.1} parent=23 // pred_region
          %s216 = sand.u32 %s119, 1
          %s217 = scalar_lea.sflag [#allocation6], %s216
          %s218 = sand.u32 %s119, 1
          %s219 = smul.addr %s218, 256
          %s220 = scalar_lea.vmem [#allocation5], %s219
          %s221 = sadd.s32 %s22, %s23
          %s222 = smul.u32 2, %s221
          %s224 = ssub.s32 4096, 4096
          %225 = vsyncadd %s217, %s224
          %s226 = smul.addr %s21, 64
          %s227 = sadd.s32 %s222, %s226
          %s228 = smul.addr %s227, 64
          %s229 = scalar_lea.hbm %s3, %s228
          %s230 = sshll.u32 %s220, 4
          %s231 = int_to_ptr.vmem [resolvable:$true] %s230
          %236 = dma.hbm_to_vmem [thread:$0]  %s229, 4096, %s231, %s217, 128, 128, 8
        $region32: #{tpu_custom_call.1} parent=23 // pred_fallthru
          _
      $region24: #{tpu_custom_call.1} parent=5 // pred_fallthru
        _
      %p237 = scmp.le.s32.totalorder 1, %s14
      %p238 = scmp.lt.s32.totalorder %s14, 3
      %p239 = pnand %p237, %p238
      %p240 = pneg %p239
      // Predicated region
      $region33: #{tpu_custom_call.1} parent=5 // pred_check
        _
      $region34: #{tpu_custom_call.1} parent=5 // pred_check_branch
        %242 = sbr.rel (%p239) target = $region36
      $region35: #{tpu_custom_call.1} parent=5 // pred_region
        %s243 = ssub.s32 %s14, 1
        // Predicated region
        $region37: #{tpu_custom_call.1} parent=35 // pred_check
          %p244 = pneg %p84
        $region38: #{tpu_custom_call.1} parent=35 // pred_check_branch
          %246 = sbr.rel (%p244) target = $region40
        $region39: #{tpu_custom_call.1} parent=35 // pred_region
          %247 = dma.done [#allocation4], 2048
        $region40: #{tpu_custom_call.1} parent=35 // pred_fallthru
          _
        %s248 = sand.u32 %s122, 1
        %s249 = scalar_lea.sflag [#allocation6], %s248
        %s250 = sand.u32 %s122, 1
        %s251 = smul.addr %s250, 256
        %s252 = scalar_lea.vmem [#allocation5], %s251
        // Predicated region
        $region41: #{tpu_custom_call.1} parent=35 // pred_check
          %p253 = pneg %p135
        $region42: #{tpu_custom_call.1} parent=35 // pred_check_branch
          %255 = sbr.rel (%p253) target = $region44
        $region43: #{tpu_custom_call.1} parent=35 // pred_region
          %256 = dma.done %s249, 4096
        $region44: #{tpu_custom_call.1} parent=35 // pred_fallthru
          _
        %s257 = sadd.s32 %s25, %s26
        %s258 = smul.u32 2, %s257
        %p259 = scmp.lt.s32.totalorder %s24, 1
        %s260 = scalar_select %p259, %s24, 1
        %p261 = scmp.lt.s32.totalorder %s258, 1
        %s262 = scalar_select %p261, %s258, 1
        %s263 = smul.addr %s260, 32
        %s264 = sadd.s32 %s262, %s263
        %s265 = smul.addr %s264, 4
        %s266 = scalar_lea.vmem %s0, %s265
        %p267 = pneg %p63
        %p268 = pneg %p60
        %p269 = pneg %p84
        %p270 = pneg %p81
        %p271 = pneg %p105
        %p272 = pneg %p102
        %s273 = sand.u32 %s122, 1
        %s274 = scalar_lea.sflag [#allocation6], %s273
        %s275 = sand.u32 %s122, 1
        %s276 = smul.addr %s275, 256
        %s277 = scalar_lea.vmem [#allocation5], %s276
        %p278 = pneg %p135
        %p279 = pneg %p132
        %p280 = pneg %p163
        %p281 = pneg %p160
        %p282 = scmp.lt.s32.totalorder %s24, 1
        %s283 = scalar_select %p282, %s24, 1
        %p284 = scmp.lt.s32.totalorder %s25, 0
        %s285 = scalar_select %p284, %s25, 0
        %s286 = sadd.s32 %s285, %s283
        %s287 = scalar_lea.vmem %s4, %s286
        %s288 = sadd.s32 %s25, %s26
        %s289 = smul.u32 2, %s288
        %p290 = scmp.lt.s32.totalorder %s24, 1
        %s291 = scalar_select %p290, %s24, 1
        %p292 = scmp.lt.s32.totalorder %s289, 1
        %s293 = scalar_select %p292, %s289, 1
        %s294 = smul.addr %s291, 32
        %s295 = sadd.s32 %s293, %s294
        %s296 = smul.addr %s295, 4
        %s297 = scalar_lea.vmem %s0, %s296
        %s298 = sadd.s32 %s25, %s26
        %s299 = smul.u32 2, %s298
        %s300 = sadd.s32 %s25, %s26
        %s301 = smul.u32 2, %s300
        %p302 = scmp.lt.s32.totalorder %s24, 1
        %s303 = scalar_select %p302, %s24, 1
        %p304 = scmp.lt.s32.totalorder %s25, 0
        %s305 = scalar_select %p304, %s25, 0
        %s306 = sadd.s32 %s305, %s303
        %s307 = scalar_lea.vmem %s4, %s306
        %p309 = scmp.eq.s32.totalorder %s26, 0
        // Predicated region
        $region45: #{tpu_custom_call.1} parent=35 // pred_check
          %p310 = pneg %p309
        $region46: #{tpu_custom_call.1} parent=35 // pred_check_branch
          %312 = sbr.rel (%p310) target = $region48
        $region47: #{tpu_custom_call.1} parent=35 // pred_region
          %v313 = vlaneseq
          %vm314 = vcmp.ge.s32.totalorder %v313, 0
          %vm315 = vcmp.lt.s32.totalorder %v313, 256
          %vm316 = vmand %vm314, %vm315
          %317 = vst.msk [vmem:[#allocation2] sm:$0x3] %vm316, 0.0
        $region48: #{tpu_custom_call.1} parent=35 // pred_fallthru
          _
        %v318 = vld [vmem:[#allocation3] sm:$0xf]
        %v319 = vld [vmem:[#allocation3 + $0x4] sm:$0xf]
        %v320 = vld [vmem:[#allocation3 + $0x8] sm:$0xf]
        %v321 = vld [vmem:[#allocation3 + $0xc] sm:$0xf]
        %v322 = vld [vmem:[#allocation3 + $0x10] sm:$0xf]
        %v323 = vld [vmem:[#allocation3 + $0x14] sm:$0xf]
        %v324 = vld [vmem:[#allocation3 + $0x18] sm:$0xf]
        %v325 = vld [vmem:[#allocation3 + $0x1c] sm:$0xf]
        %v326 = vld [vmem:[#allocation3 + $0x20] sm:$0xf]
        %v327 = vld [vmem:[#allocation3 + $0x24] sm:$0xf]
        %v328 = vld [vmem:[#allocation3 + $0x28] sm:$0xf]
        %v329 = vld [vmem:[#allocation3 + $0x2c] sm:$0xf]
        %v330 = vld [vmem:[#allocation3 + $0x30] sm:$0xf]
        %v331 = vld [vmem:[#allocation3 + $0x34] sm:$0xf]
        %v332 = vld [vmem:[#allocation3 + $0x38] sm:$0xf]
        %v333 = vld [vmem:[#allocation3 + $0x3c] sm:$0xf]
        %v334 = vld [vmem:[#allocation3 + $0x40] sm:$0xf]
        %v335 = vld [vmem:[#allocation3 + $0x44] sm:$0xf]
        %v336 = vld [vmem:[#allocation3 + $0x48] sm:$0xf]
        %v337 = vld [vmem:[#allocation3 + $0x4c] sm:$0xf]
        %v338 = vld [vmem:[#allocation3 + $0x50] sm:$0xf]
        %v339 = vld [vmem:[#allocation3 + $0x54] sm:$0xf]
        %v340 = vld [vmem:[#allocation3 + $0x58] sm:$0xf]
        %v341 = vld [vmem:[#allocation3 + $0x5c] sm:$0xf]
        %v342 = vld [vmem:[#allocation3 + $0x60] sm:$0xf]
        %v343 = vld [vmem:[#allocation3 + $0x64] sm:$0xf]
        %v344 = vld [vmem:[#allocation3 + $0x68] sm:$0xf]
        %v345 = vld [vmem:[#allocation3 + $0x6c] sm:$0xf]
        %v346 = vld [vmem:[#allocation3 + $0x70] sm:$0xf]
        %v347 = vld [vmem:[#allocation3 + $0x74] sm:$0xf]
        %v348 = vld [vmem:[#allocation3 + $0x78] sm:$0xf]
        %v349 = vld [vmem:[#allocation3 + $0x7c] sm:$0xf]
        %v350 = vld [vmem:[%s297] sm:$0xff]
        %v351 = vld [vmem:[%s297 + $0x8] sm:$0xff]
        %v352 = vld [vmem:[%s297 + $0x10] sm:$0xff]
        %v353 = vld [vmem:[%s297 + $0x18] sm:$0xff]
        %v354 = vld [vmem:[%s297 + $0x20] sm:$0xff]
        %v355 = vld [vmem:[%s297 + $0x28] sm:$0xff]
        %v356 = vld [vmem:[%s297 + $0x30] sm:$0xff]
        %v357 = vld [vmem:[%s297 + $0x38] sm:$0xff]
        %v358 = vld [vmem:[%s297 + $0x40] sm:$0xff]
        %v359 = vld [vmem:[%s297 + $0x48] sm:$0xff]
        %v360 = vld [vmem:[%s297 + $0x50] sm:$0xff]
        %v361 = vld [vmem:[%s297 + $0x58] sm:$0xff]
        %v362 = vld [vmem:[%s297 + $0x60] sm:$0xff]
        %v363 = vld [vmem:[%s297 + $0x68] sm:$0xff]
        %v364 = vld [vmem:[%s297 + $0x70] sm:$0xff]
        %v365 = vld [vmem:[%s297 + $0x78] sm:$0xff]
        %v366 = vld [vmem:[%s2] sm:$0xff]
        %v367 = vld [vmem:[%s2 + $0x8] sm:$0xff]
        %v368 = vld [vmem:[%s2 + $0x10] sm:$0xff]
        %v369 = vld [vmem:[%s2 + $0x18] sm:$0xff]
        %v370 = vld [vmem:[%s2 + $0x20] sm:$0xff]
        %v371 = vld [vmem:[%s2 + $0x28] sm:$0xff]
        %v372 = vld [vmem:[%s2 + $0x30] sm:$0xff]
        %v373 = vld [vmem:[%s2 + $0x38] sm:$0xff]
        %v374 = vld [vmem:[%s2 + $0x40] sm:$0xff]
        %v375 = vld [vmem:[%s2 + $0x48] sm:$0xff]
        %v376 = vld [vmem:[%s2 + $0x50] sm:$0xff]
        %v377 = vld [vmem:[%s2 + $0x58] sm:$0xff]
        %v378 = vld [vmem:[%s2 + $0x60] sm:$0xff]
        %v379 = vld [vmem:[%s2 + $0x68] sm:$0xff]
        %v380 = vld [vmem:[%s2 + $0x70] sm:$0xff]
        %v381 = vld [vmem:[%s2 + $0x78] sm:$0xff]
        %v382 = vld [vmem:[%s2 + $0x80] sm:$0xff]
        %v383 = vld [vmem:[%s2 + $0x88] sm:$0xff]
        %v384 = vld [vmem:[%s2 + $0x90] sm:$0xff]
        %v385 = vld [vmem:[%s2 + $0x98] sm:$0xff]
        %v386 = vld [vmem:[%s2 + $0xa0] sm:$0xff]
        %v387 = vld [vmem:[%s2 + $0xa8] sm:$0xff]
        %v388 = vld [vmem:[%s2 + $0xb0] sm:$0xff]
        %v389 = vld [vmem:[%s2 + $0xb8] sm:$0xff]
        %v390 = vld [vmem:[%s2 + $0xc0] sm:$0xff]
        %v391 = vld [vmem:[%s2 + $0xc8] sm:$0xff]
        %v392 = vld [vmem:[%s2 + $0xd0] sm:$0xff]
        %v393 = vld [vmem:[%s2 + $0xd8] sm:$0xff]
        %v394 = vld [vmem:[%s2 + $0xe0] sm:$0xff]
        %v395 = vld [vmem:[%s2 + $0xe8] sm:$0xff]
        %v396 = vld [vmem:[%s2 + $0xf0] sm:$0xff]
        %v397 = vld [vmem:[%s2 + $0xf8] sm:$0xff]
        %399 = vset.pattern.permute.xlu0 0
        %400 = vperm.xlu0 %399, %v366
        %v401 = vpop.permute.xlu0 %400
        %404 = vset.pattern.permute.xlu0 0
        %405 = vperm.xlu0 %404, %v367
        %v406 = vpop.permute.xlu0 %405
        %409 = vset.pattern.permute.xlu0 0
        %410 = vperm.xlu0 %409, %v368
        %v411 = vpop.permute.xlu0 %410
        %414 = vset.pattern.permute.xlu0 0
        %415 = vperm.xlu0 %414, %v369
        %v416 = vpop.permute.xlu0 %415
        %419 = vset.pattern.permute.xlu0 0
        %420 = vperm.xlu0 %419, %v370
        %v421 = vpop.permute.xlu0 %420
        %424 = vset.pattern.permute.xlu0 0
        %425 = vperm.xlu0 %424, %v371
        %v426 = vpop.permute.xlu0 %425
        %429 = vset.pattern.permute.xlu0 0
        %430 = vperm.xlu0 %429, %v372
        %v431 = vpop.permute.xlu0 %430
        %434 = vset.pattern.permute.xlu0 0
        %435 = vperm.xlu0 %434, %v373
        %v436 = vpop.permute.xlu0 %435
        %439 = vset.pattern.permute.xlu0 0
        %440 = vperm.xlu0 %439, %v374
        %v441 = vpop.permute.xlu0 %440
        %444 = vset.pattern.permute.xlu0 0
        %445 = vperm.xlu0 %444, %v375
        %v446 = vpop.permute.xlu0 %445
        %449 = vset.pattern.permute.xlu0 0
        %450 = vperm.xlu0 %449, %v376
        %v451 = vpop.permute.xlu0 %450
        %454 = vset.pattern.permute.xlu0 0
        %455 = vperm.xlu0 %454, %v377
        %v456 = vpop.permute.xlu0 %455
        %459 = vset.pattern.permute.xlu0 0
        %460 = vperm.xlu0 %459, %v378
        %v461 = vpop.permute.xlu0 %460
        %464 = vset.pattern.permute.xlu0 0
        %465 = vperm.xlu0 %464, %v379
        %v466 = vpop.permute.xlu0 %465
        %469 = vset.pattern.permute.xlu0 0
        %470 = vperm.xlu0 %469, %v380
        %v471 = vpop.permute.xlu0 %470
        %474 = vset.pattern.permute.xlu0 0
        %475 = vperm.xlu0 %474, %v381
        %v476 = vpop.permute.xlu0 %475
        %479 = vset.pattern.permute.xlu0 0
        %480 = vperm.xlu0 %479, %v382
        %v481 = vpop.permute.xlu0 %480
        %484 = vset.pattern.permute.xlu0 0
        %485 = vperm.xlu0 %484, %v383
        %v486 = vpop.permute.xlu0 %485
        %489 = vset.pattern.permute.xlu0 0
        %490 = vperm.xlu0 %489, %v384
        %v491 = vpop.permute.xlu0 %490
        %494 = vset.pattern.permute.xlu0 0
        %495 = vperm.xlu0 %494, %v385
        %v496 = vpop.permute.xlu0 %495
        %499 = vset.pattern.permute.xlu0 0
        %500 = vperm.xlu0 %499, %v386
        %v501 = vpop.permute.xlu0 %500
        %504 = vset.pattern.permute.xlu0 0
        %505 = vperm.xlu0 %504, %v387
        %v506 = vpop.permute.xlu0 %505
        %509 = vset.pattern.permute.xlu0 0
        %510 = vperm.xlu0 %509, %v388
        %v511 = vpop.permute.xlu0 %510
        %514 = vset.pattern.permute.xlu0 0
        %515 = vperm.xlu0 %514, %v389
        %v516 = vpop.permute.xlu0 %515
        %519 = vset.pattern.permute.xlu0 0
        %520 = vperm.xlu0 %519, %v390
        %v521 = vpop.permute.xlu0 %520
        %524 = vset.pattern.permute.xlu0 0
        %525 = vperm.xlu0 %524, %v391
        %v526 = vpop.permute.xlu0 %525
        %529 = vset.pattern.permute.xlu0 0
        %530 = vperm.xlu0 %529, %v392
        %v531 = vpop.permute.xlu0 %530
        %534 = vset.pattern.permute.xlu0 0
        %535 = vperm.xlu0 %534, %v393
        %v536 = vpop.permute.xlu0 %535
        %539 = vset.pattern.permute.xlu0 0
        %540 = vperm.xlu0 %539, %v394
        %v541 = vpop.permute.xlu0 %540
        %544 = vset.pattern.permute.xlu0 0
        %545 = vperm.xlu0 %544, %v395
        %v546 = vpop.permute.xlu0 %545
        %549 = vset.pattern.permute.xlu0 0
        %550 = vperm.xlu0 %549, %v396
        %v551 = vpop.permute.xlu0 %550
        %554 = vset.pattern.permute.xlu0 0
        %555 = vperm.xlu0 %554, %v397
        %v556 = vpop.permute.xlu0 %555
        %v590 = vunpack.c.l.b16 %v318
        %v591 = vunpack.c.l.b16 %v319
        %v592 = vunpack.c.l.b16 %v320
        %v593 = vunpack.c.l.b16 %v321
        %v594 = vunpack.c.l.b16 %v322
        %v595 = vunpack.c.l.b16 %v323
        %v596 = vunpack.c.l.b16 %v324
        %v597 = vunpack.c.l.b16 %v325
        %v598 = vunpack.c.l.b16 %v326
        %v599 = vunpack.c.l.b16 %v327
        %v600 = vunpack.c.l.b16 %v328
        %v601 = vunpack.c.l.b16 %v329
        %v602 = vunpack.c.l.b16 %v330
        %v603 = vunpack.c.l.b16 %v331
        %v604 = vunpack.c.l.b16 %v332
        %v605 = vunpack.c.l.b16 %v333
        %v606 = vunpack.c.l.b16 %v334
        %v607 = vunpack.c.l.b16 %v335
        %v608 = vunpack.c.l.b16 %v336
        %v609 = vunpack.c.l.b16 %v337
        %v610 = vunpack.c.l.b16 %v338
        %v611 = vunpack.c.l.b16 %v339
        %v612 = vunpack.c.l.b16 %v340
        %v613 = vunpack.c.l.b16 %v341
        %v614 = vunpack.c.l.b16 %v342
        %v615 = vunpack.c.l.b16 %v343
        %v616 = vunpack.c.l.b16 %v344
        %v617 = vunpack.c.l.b16 %v345
        %v618 = vunpack.c.l.b16 %v346
        %v619 = vunpack.c.l.b16 %v347
        %v620 = vunpack.c.l.b16 %v348
        %v621 = vunpack.c.l.b16 %v349
        %v622 = vpack.c.b16 %v591, %v590
        %v623 = vpack.c.b16 %v593, %v592
        %v624 = vpack.c.b16 %v595, %v594
        %v625 = vpack.c.b16 %v597, %v596
        %v626 = vpack.c.b16 %v599, %v598
        %v627 = vpack.c.b16 %v601, %v600
        %v628 = vpack.c.b16 %v603, %v602
        %v629 = vpack.c.b16 %v605, %v604
        %v630 = vpack.c.b16 %v607, %v606
        %v631 = vpack.c.b16 %v609, %v608
        %v632 = vpack.c.b16 %v611, %v610
        %v633 = vpack.c.b16 %v613, %v612
        %v634 = vpack.c.b16 %v615, %v614
        %v635 = vpack.c.b16 %v617, %v616
        %v636 = vpack.c.b16 %v619, %v618
        %v637 = vpack.c.b16 %v621, %v620
        %v670 = vunpack.c.l.b16 %v350
        %v671 = vunpack.c.h.b16 %v350
        %v672 = vunpack.c.l.b16 %v351
        %v673 = vunpack.c.h.b16 %v351
        %v674 = vunpack.c.l.b16 %v352
        %v675 = vunpack.c.h.b16 %v352
        %v676 = vunpack.c.l.b16 %v353
        %v677 = vunpack.c.h.b16 %v353
        %v678 = vunpack.c.l.b16 %v354
        %v679 = vunpack.c.h.b16 %v354
        %v680 = vunpack.c.l.b16 %v355
        %v681 = vunpack.c.h.b16 %v355
        %v682 = vunpack.c.l.b16 %v356
        %v683 = vunpack.c.h.b16 %v356
        %v684 = vunpack.c.l.b16 %v357
        %v685 = vunpack.c.h.b16 %v357
        %v686 = vunpack.c.l.b16 %v358
        %v687 = vunpack.c.h.b16 %v358
        %v688 = vunpack.c.l.b16 %v359
        %v689 = vunpack.c.h.b16 %v359
        %v690 = vunpack.c.l.b16 %v360
        %v691 = vunpack.c.h.b16 %v360
        %v692 = vunpack.c.l.b16 %v361
        %v693 = vunpack.c.h.b16 %v361
        %v694 = vunpack.c.l.b16 %v362
        %v695 = vunpack.c.h.b16 %v362
        %v696 = vunpack.c.l.b16 %v363
        %v697 = vunpack.c.h.b16 %v363
        %v698 = vunpack.c.l.b16 %v364
        %v699 = vunpack.c.h.b16 %v364
        %v700 = vunpack.c.l.b16 %v365
        %v701 = vunpack.c.h.b16 %v365
        %v702 = vpack.c.b16 %v672, %v670
        %v703 = vpack.c.b16 %v673, %v671
        %v704 = vpack.c.b16 %v676, %v674
        %v705 = vpack.c.b16 %v677, %v675
        %v706 = vpack.c.b16 %v680, %v678
        %v707 = vpack.c.b16 %v681, %v679
        %v708 = vpack.c.b16 %v684, %v682
        %v709 = vpack.c.b16 %v685, %v683
        %v710 = vpack.c.b16 %v688, %v686
        %v711 = vpack.c.b16 %v689, %v687
        %v712 = vpack.c.b16 %v692, %v690
        %v713 = vpack.c.b16 %v693, %v691
        %v714 = vpack.c.b16 %v696, %v694
        %v715 = vpack.c.b16 %v697, %v695
        %v716 = vpack.c.b16 %v700, %v698
        %v717 = vpack.c.b16 %v701, %v699
        %734 = vmatprep.subr.bf16.mxu0 %v703
        %735 = vmatpush1.bf16.msra.mxu0 %v702
        %736 = vmatprep.subr.bf16.mxu0 %v705
        %737 = vmatpush1.bf16.msra.mxu0 %v704
        %738 = vmatprep.subr.bf16.mxu0 %v707
        %739 = vmatpush1.bf16.msra.mxu0 %v706
        %740 = vmatprep.subr.bf16.mxu0 %v709
        %741 = vmatpush1.bf16.msra.mxu0 %v708
        %742 = vmatprep.subr.bf16.mxu0 %v711
        %743 = vmatpush1.bf16.msra.mxu0 %v710
        %744 = vmatprep.subr.bf16.mxu0 %v713
        %745 = vmatpush1.bf16.msra.mxu0 %v712
        %746 = vmatprep.subr.bf16.mxu0 %v715
        %747 = vmatpush1.bf16.msra.mxu0 %v714
        %748 = vmatprep.subr.bf16.mxu0 %v717
        %749 = vmatpush1.bf16.msra.mxu0 %v716
        %750 = vmatprep.subr.bf16.mxu0 0
        %751 = vmatpush1.bf16.msra.mxu0 0
        %752 = vmatprep.subr.bf16.mxu0 0
        %753 = vmatpush1.bf16.msra.mxu0 0
        %754 = vmatprep.subr.bf16.mxu0 0
        %755 = vmatpush1.bf16.msra.mxu0 0
        %756 = vmatprep.subr.bf16.mxu0 0
        %757 = vmatpush1.bf16.msra.mxu0 0
        %758 = vmatprep.subr.bf16.mxu0 0
        %759 = vmatpush1.bf16.msra.mxu0 0
        %760 = vmatprep.subr.bf16.mxu0 0
        %761 = vmatpush1.bf16.msra.mxu0 0
        %762 = vmatprep.subr.bf16.mxu0 0
        %763 = vmatpush1.bf16.msra.mxu0 0
        %764 = vmatprep.subr.bf16.mxu0 0
        %765 = vmatpush1.bf16.msra.mxu0 0
        %766 = vmatprep.mubr.bf16.mxu0 0
        %767 = vmatmul.mubr.bf16.gmra.mrb[0].mxu0 %v622
        %v768 = vpop.f32.mrb[0].mxu0
        %v769 = vadd.f32 %v401, %v768
        %v770 = vpop.f32.mrb[0].mxu0
        %v771 = vadd.f32 %v401, %v770
        %v772 = vpop.f32.mrb[0].mxu0
        %v773 = vadd.f32 %v406, %v772
        %v774 = vpop.f32.mrb[0].mxu0
        %v775 = vadd.f32 %v406, %v774
        %776 = vmatprep.mubr.bf16.mxu0 0
        %777 = vmatmul.mubr.bf16.gmra.mrb[0].mxu0 %v623
        %v778 = vpop.f32.mrb[0].mxu0
        %v779 = vadd.f32 %v411, %v778
        %v780 = vpop.f32.mrb[0].mxu0
        %v781 = vadd.f32 %v411, %v780
        %v782 = vpop.f32.mrb[0].mxu0
        %v783 = vadd.f32 %v416, %v782
        %v784 = vpop.f32.mrb[0].mxu0
        %v785 = vadd.f32 %v416, %v784
        %786 = vmatprep.mubr.bf16.mxu0 0
        %787 = vmatmul.mubr.bf16.gmra.mrb[0].mxu0 %v624
        %v788 = vpop.f32.mrb[0].mxu0
        %v789 = vadd.f32 %v421, %v788
        %v790 = vpop.f32.mrb[0].mxu0
        %v791 = vadd.f32 %v421, %v790
        %v792 = vpop.f32.mrb[0].mxu0
        %v793 = vadd.f32 %v426, %v792
        %v794 = vpop.f32.mrb[0].mxu0
        %v795 = vadd.f32 %v426, %v794
        %796 = vmatprep.mubr.bf16.mxu0 0
        %797 = vmatmul.mubr.bf16.gmra.mrb[0].mxu0 %v625
        %v798 = vpop.f32.mrb[0].mxu0
        %v799 = vadd.f32 %v431, %v798
        %v800 = vpop.f32.mrb[0].mxu0
        %v801 = vadd.f32 %v431, %v800
        %v802 = vpop.f32.mrb[0].mxu0
        %v803 = vadd.f32 %v436, %v802
        %v804 = vpop.f32.mrb[0].mxu0
        %v805 = vadd.f32 %v436, %v804
        %806 = vmatprep.mubr.bf16.mxu0 0
        %807 = vmatmul.mubr.bf16.gmra.mrb[0].mxu0 %v626
        %v808 = vpop.f32.mrb[0].mxu0
        %v809 = vadd.f32 %v441, %v808
        %v810 = vpop.f32.mrb[0].mxu0
        %v811 = vadd.f32 %v441, %v810
        %v812 = vpop.f32.mrb[0].mxu0
        %v813 = vadd.f32 %v446, %v812
        %v814 = vpop.f32.mrb[0].mxu0
        %v815 = vadd.f32 %v446, %v814
        %816 = vmatprep.mubr.bf16.mxu0 0
        %817 = vmatmul.mubr.bf16.gmra.mrb[0].mxu0 %v627
        %v818 = vpop.f32.mrb[0].mxu0
        %v819 = vadd.f32 %v451, %v818
        %v820 = vpop.f32.mrb[0].mxu0
        %v821 = vadd.f32 %v451, %v820
        %v822 = vpop.f32.mrb[0].mxu0
        %v823 = vadd.f32 %v456, %v822
        %v824 = vpop.f32.mrb[0].mxu0
        %v825 = vadd.f32 %v456, %v824
        %826 = vmatprep.mubr.bf16.mxu0 0
        %827 = vmatmul.mubr.bf16.gmra.mrb[0].mxu0 %v628
        %v828 = vpop.f32.mrb[0].mxu0
        %v829 = vadd.f32 %v461, %v828
        %v830 = vpop.f32.mrb[0].mxu0
        %v831 = vadd.f32 %v461, %v830
        %v832 = vpop.f32.mrb[0].mxu0
        %v833 = vadd.f32 %v466, %v832
        %v834 = vpop.f32.mrb[0].mxu0
        %v835 = vadd.f32 %v466, %v834
        %836 = vmatprep.mubr.bf16.mxu0 0
        %837 = vmatmul.mubr.bf16.gmra.mrb[0].mxu0 %v629
        %v838 = vpop.f32.mrb[0].mxu0
        %v839 = vadd.f32 %v471, %v838
        %v840 = vpop.f32.mrb[0].mxu0
        %v841 = vadd.f32 %v471, %v840
        %v842 = vpop.f32.mrb[0].mxu0
        %v843 = vadd.f32 %v476, %v842
        %v844 = vpop.f32.mrb[0].mxu0
        %v845 = vadd.f32 %v476, %v844
        %846 = vmatprep.mubr.bf16.mxu0 0
        %847 = vmatmul.mubr.bf16.gmra.mrb[0].mxu0 %v630
        %v848 = vpop.f32.mrb[0].mxu0
        %v849 = vadd.f32 %v481, %v848
        %v850 = vpop.f32.mrb[0].mxu0
        %v851 = vadd.f32 %v481, %v850
        %v852 = vpop.f32.mrb[0].mxu0
        %v853 = vadd.f32 %v486, %v852
        %v854 = vpop.f32.mrb[0].mxu0
        %v855 = vadd.f32 %v486, %v854
        %856 = vmatprep.mubr.bf16.mxu0 0
        %857 = vmatmul.mubr.bf16.gmra.mrb[0].mxu0 %v631
        %v858 = vpop.f32.mrb[0].mxu0
        %v859 = vadd.f32 %v491, %v858
        %v860 = vpop.f32.mrb[0].mxu0
        %v861 = vadd.f32 %v491, %v860
        %v862 = vpop.f32.mrb[0].mxu0
        %v863 = vadd.f32 %v496, %v862
        %v864 = vpop.f32.mrb[0].mxu0
        %v865 = vadd.f32 %v496, %v864
        %866 = vmatprep.mubr.bf16.mxu0 0
        %867 = vmatmul.mubr.bf16.gmra.mrb[0].mxu0 %v632
        %v868 = vpop.f32.mrb[0].mxu0
        %v869 = vadd.f32 %v501, %v868
        %v870 = vpop.f32.mrb[0].mxu0
        %v871 = vadd.f32 %v501, %v870
        %v872 = vpop.f32.mrb[0].mxu0
        %v873 = vadd.f32 %v506, %v872
        %v874 = vpop.f32.mrb[0].mxu0
        %v875 = vadd.f32 %v506, %v874
        %876 = vmatprep.mubr.bf16.mxu0 0
        %877 = vmatmul.mubr.bf16.gmra.mrb[0].mxu0 %v633
        %v878 = vpop.f32.mrb[0].mxu0
        %v879 = vadd.f32 %v511, %v878
        %v880 = vpop.f32.mrb[0].mxu0
        %v881 = vadd.f32 %v511, %v880
        %v882 = vpop.f32.mrb[0].mxu0
        %v883 = vadd.f32 %v516, %v882
        %v884 = vpop.f32.mrb[0].mxu0
        %v885 = vadd.f32 %v516, %v884
        %886 = vmatprep.mubr.bf16.mxu0 0
        %887 = vmatmul.mubr.bf16.gmra.mrb[0].mxu0 %v634
        %v888 = vpop.f32.mrb[0].mxu0
        %v889 = vadd.f32 %v521, %v888
        %v890 = vpop.f32.mrb[0].mxu0
        %v891 = vadd.f32 %v521, %v890
        %v892 = vpop.f32.mrb[0].mxu0
        %v893 = vadd.f32 %v526, %v892
        %v894 = vpop.f32.mrb[0].mxu0
        %v895 = vadd.f32 %v526, %v894
        %896 = vmatprep.mubr.bf16.mxu0 0
        %897 = vmatmul.mubr.bf16.gmra.mrb[0].mxu0 %v635
        %v898 = vpop.f32.mrb[0].mxu0
        %v899 = vadd.f32 %v531, %v898
        %v900 = vpop.f32.mrb[0].mxu0
        %v901 = vadd.f32 %v531, %v900
        %v902 = vpop.f32.mrb[0].mxu0
        %v903 = vadd.f32 %v536, %v902
        %v904 = vpop.f32.mrb[0].mxu0
        %v905 = vadd.f32 %v536, %v904
        %906 = vmatprep.mubr.bf16.mxu0 0
        %907 = vmatmul.mubr.bf16.gmra.mrb[0].mxu0 %v636
        %v908 = vpop.f32.mrb[0].mxu0
        %v909 = vadd.f32 %v541, %v908
        %v910 = vpop.f32.mrb[0].mxu0
        %v911 = vadd.f32 %v541, %v910
        %v912 = vpop.f32.mrb[0].mxu0
        %v913 = vadd.f32 %v546, %v912
        %v914 = vpop.f32.mrb[0].mxu0
        %v915 = vadd.f32 %v546, %v914
        %916 = vmatprep.mubr.bf16.mxu0 0
        %917 = vmatmul.mubr.bf16.gmra.mrb[0].mxu0 %v637
        %v918 = vpop.f32.mrb[0].mxu0
        %v919 = vadd.f32 %v551, %v918
        %v920 = vpop.f32.mrb[0].mxu0
        %v921 = vadd.f32 %v551, %v920
        %v922 = vpop.f32.mrb[0].mxu0
        %v923 = vadd.f32 %v556, %v922
        %v924 = vpop.f32.mrb[0].mxu0
        %v925 = vadd.f32 %v556, %v924
        %926 = vdwg.mxu0
        %v927 = vld [vmem:[%s252] sm:$0xff]
        %v928 = vld [vmem:[%s252 + $0x8] sm:$0xff]
        %v929 = vld [vmem:[%s252 + $0x10] sm:$0xff]
        %v930 = vld [vmem:[%s252 + $0x18] sm:$0xff]
        %v931 = vld [vmem:[%s252 + $0x20] sm:$0xff]
        %v932 = vld [vmem:[%s252 + $0x28] sm:$0xff]
        %v933 = vld [vmem:[%s252 + $0x30] sm:$0xff]
        %v934 = vld [vmem:[%s252 + $0x38] sm:$0xff]
        %v935 = vld [vmem:[%s252 + $0x40] sm:$0xff]
        %v936 = vld [vmem:[%s252 + $0x48] sm:$0xff]
        %v937 = vld [vmem:[%s252 + $0x50] sm:$0xff]
        %v938 = vld [vmem:[%s252 + $0x58] sm:$0xff]
        %v939 = vld [vmem:[%s252 + $0x60] sm:$0xff]
        %v940 = vld [vmem:[%s252 + $0x68] sm:$0xff]
        %v941 = vld [vmem:[%s252 + $0x70] sm:$0xff]
        %v942 = vld [vmem:[%s252 + $0x78] sm:$0xff]
        %v943 = vld [vmem:[%s252 + $0x80] sm:$0xff]
        %v944 = vld [vmem:[%s252 + $0x88] sm:$0xff]
        %v945 = vld [vmem:[%s252 + $0x90] sm:$0xff]
        %v946 = vld [vmem:[%s252 + $0x98] sm:$0xff]
        %v947 = vld [vmem:[%s252 + $0xa0] sm:$0xff]
        %v948 = vld [vmem:[%s252 + $0xa8] sm:$0xff]
        %v949 = vld [vmem:[%s252 + $0xb0] sm:$0xff]
        %v950 = vld [vmem:[%s252 + $0xb8] sm:$0xff]
        %v951 = vld [vmem:[%s252 + $0xc0] sm:$0xff]
        %v952 = vld [vmem:[%s252 + $0xc8] sm:$0xff]
        %v953 = vld [vmem:[%s252 + $0xd0] sm:$0xff]
        %v954 = vld [vmem:[%s252 + $0xd8] sm:$0xff]
        %v955 = vld [vmem:[%s252 + $0xe0] sm:$0xff]
        %v956 = vld [vmem:[%s252 + $0xe8] sm:$0xff]
        %v957 = vld [vmem:[%s252 + $0xf0] sm:$0xff]
        %v958 = vld [vmem:[%s252 + $0xf8] sm:$0xff]
        %v959 = vunpack.c.l.bf16 %v927
        %v960 = vunpack.c.h.bf16 %v927
        %v961 = vunpack.c.l.bf16 %v928
        %v962 = vunpack.c.h.bf16 %v928
        %v963 = vunpack.c.l.bf16 %v929
        %v964 = vunpack.c.h.bf16 %v929
        %v965 = vunpack.c.l.bf16 %v930
        %v966 = vunpack.c.h.bf16 %v930
        %v967 = vunpack.c.l.bf16 %v931
        %v968 = vunpack.c.h.bf16 %v931
        %v969 = vunpack.c.l.bf16 %v932
        %v970 = vunpack.c.h.bf16 %v932
        %v971 = vunpack.c.l.bf16 %v933
        %v972 = vunpack.c.h.bf16 %v933
        %v973 = vunpack.c.l.bf16 %v934
        %v974 = vunpack.c.h.bf16 %v934
        %v975 = vunpack.c.l.bf16 %v935
        %v976 = vunpack.c.h.bf16 %v935
        %v977 = vunpack.c.l.bf16 %v936
        %v978 = vunpack.c.h.bf16 %v936
        %v979 = vunpack.c.l.bf16 %v937
        %v980 = vunpack.c.h.bf16 %v937
        %v981 = vunpack.c.l.bf16 %v938
        %v982 = vunpack.c.h.bf16 %v938
        %v983 = vunpack.c.l.bf16 %v939
        %v984 = vunpack.c.h.bf16 %v939
        %v985 = vunpack.c.l.bf16 %v940
        %v986 = vunpack.c.h.bf16 %v940
        %v987 = vunpack.c.l.bf16 %v941
        %v988 = vunpack.c.h.bf16 %v941
        %v989 = vunpack.c.l.bf16 %v942
        %v990 = vunpack.c.h.bf16 %v942
        %v991 = vunpack.c.l.bf16 %v943
        %v992 = vunpack.c.h.bf16 %v943
        %v993 = vunpack.c.l.bf16 %v944
        %v994 = vunpack.c.h.bf16 %v944
        %v995 = vunpack.c.l.bf16 %v945
        %v996 = vunpack.c.h.bf16 %v945
        %v997 = vunpack.c.l.bf16 %v946
        %v998 = vunpack.c.h.bf16 %v946
        %v999 = vunpack.c.l.bf16 %v947
        %v1000 = vunpack.c.h.bf16 %v947
        %v1001 = vunpack.c.l.bf16 %v948
        %v1002 = vunpack.c.h.bf16 %v948
        %v1003 = vunpack.c.l.bf16 %v949
        %v1004 = vunpack.c.h.bf16 %v949
        %v1005 = vunpack.c.l.bf16 %v950
        %v1006 = vunpack.c.h.bf16 %v950
        %v1007 = vunpack.c.l.bf16 %v951
        %v1008 = vunpack.c.h.bf16 %v951
        %v1009 = vunpack.c.l.bf16 %v952
        %v1010 = vunpack.c.h.bf16 %v952
        %v1011 = vunpack.c.l.bf16 %v953
        %v1012 = vunpack.c.h.bf16 %v953
        %v1013 = vunpack.c.l.bf16 %v954
        %v1014 = vunpack.c.h.bf16 %v954
        %v1015 = vunpack.c.l.bf16 %v955
        %v1016 = vunpack.c.h.bf16 %v955
        %v1017 = vunpack.c.l.bf16 %v956
        %v1018 = vunpack.c.h.bf16 %v956
        %v1019 = vunpack.c.l.bf16 %v957
        %v1020 = vunpack.c.h.bf16 %v957
        %v1021 = vunpack.c.l.bf16 %v958
        %v1022 = vunpack.c.h.bf16 %v958
        %v1023 = vsub.f32 %v769, %v959
        %v1024 = vsub.f32 %v771, %v960
        %v1025 = vsub.f32 %v773, %v961
        %v1026 = vsub.f32 %v775, %v962
        %v1027 = vsub.f32 %v779, %v963
        %v1028 = vsub.f32 %v781, %v964
        %v1029 = vsub.f32 %v783, %v965
        %v1030 = vsub.f32 %v785, %v966
        %v1031 = vsub.f32 %v789, %v967
        %v1032 = vsub.f32 %v791, %v968
        %v1033 = vsub.f32 %v793, %v969
        %v1034 = vsub.f32 %v795, %v970
        %v1035 = vsub.f32 %v799, %v971
        %v1036 = vsub.f32 %v801, %v972
        %v1037 = vsub.f32 %v803, %v973
        %v1038 = vsub.f32 %v805, %v974
        %v1039 = vsub.f32 %v809, %v975
        %v1040 = vsub.f32 %v811, %v976
        %v1041 = vsub.f32 %v813, %v977
        %v1042 = vsub.f32 %v815, %v978
        %v1043 = vsub.f32 %v819, %v979
        %v1044 = vsub.f32 %v821, %v980
        %v1045 = vsub.f32 %v823, %v981
        %v1046 = vsub.f32 %v825, %v982
        %v1047 = vsub.f32 %v829, %v983
        %v1048 = vsub.f32 %v831, %v984
        %v1049 = vsub.f32 %v833, %v985
        %v1050 = vsub.f32 %v835, %v986
        %v1051 = vsub.f32 %v839, %v987
        %v1052 = vsub.f32 %v841, %v988
        %v1053 = vsub.f32 %v843, %v989
        %v1054 = vsub.f32 %v845, %v990
        %v1055 = vsub.f32 %v849, %v991
        %v1056 = vsub.f32 %v851, %v992
        %v1057 = vsub.f32 %v853, %v993
        %v1058 = vsub.f32 %v855, %v994
        %v1059 = vsub.f32 %v859, %v995
        %v1060 = vsub.f32 %v861, %v996
        %v1061 = vsub.f32 %v863, %v997
        %v1062 = vsub.f32 %v865, %v998
        %v1063 = vsub.f32 %v869, %v999
        %v1064 = vsub.f32 %v871, %v1000
        %v1065 = vsub.f32 %v873, %v1001
        %v1066 = vsub.f32 %v875, %v1002
        %v1067 = vsub.f32 %v879, %v1003
        %v1068 = vsub.f32 %v881, %v1004
        %v1069 = vsub.f32 %v883, %v1005
        %v1070 = vsub.f32 %v885, %v1006
        %v1071 = vsub.f32 %v889, %v1007
        %v1072 = vsub.f32 %v891, %v1008
        %v1073 = vsub.f32 %v893, %v1009
        %v1074 = vsub.f32 %v895, %v1010
        %v1075 = vsub.f32 %v899, %v1011
        %v1076 = vsub.f32 %v901, %v1012
        %v1077 = vsub.f32 %v903, %v1013
        %v1078 = vsub.f32 %v905, %v1014
        %v1079 = vsub.f32 %v909, %v1015
        %v1080 = vsub.f32 %v911, %v1016
        %v1081 = vsub.f32 %v913, %v1017
        %v1082 = vsub.f32 %v915, %v1018
        %v1083 = vsub.f32 %v919, %v1019
        %v1084 = vsub.f32 %v921, %v1020
        %v1085 = vsub.f32 %v923, %v1021
        %v1086 = vsub.f32 %v925, %v1022
        %v1087 = vld [vmem:[#allocation2] sm:$0x3]
        %v1088 = vmul.f32 %v1023, %v1023
        %v1089 = vmul.f32 %v1024, %v1024
        %v1090 = vmul.f32 %v1025, %v1025
        %v1091 = vmul.f32 %v1026, %v1026
        %v1092 = vmul.f32 %v1027, %v1027
        %v1093 = vmul.f32 %v1028, %v1028
        %v1094 = vmul.f32 %v1029, %v1029
        %v1095 = vmul.f32 %v1030, %v1030
        %v1096 = vmul.f32 %v1031, %v1031
        %v1097 = vmul.f32 %v1032, %v1032
        %v1098 = vmul.f32 %v1033, %v1033
        %v1099 = vmul.f32 %v1034, %v1034
        %v1100 = vmul.f32 %v1035, %v1035
        %v1101 = vmul.f32 %v1036, %v1036
        %v1102 = vmul.f32 %v1037, %v1037
        %v1103 = vmul.f32 %v1038, %v1038
        %v1104 = vmul.f32 %v1039, %v1039
        %v1105 = vmul.f32 %v1040, %v1040
        %v1106 = vmul.f32 %v1041, %v1041
        %v1107 = vmul.f32 %v1042, %v1042
        %v1108 = vmul.f32 %v1043, %v1043
        %v1109 = vmul.f32 %v1044, %v1044
        %v1110 = vmul.f32 %v1045, %v1045
        %v1111 = vmul.f32 %v1046, %v1046
        %v1112 = vmul.f32 %v1047, %v1047
        %v1113 = vmul.f32 %v1048, %v1048
        %v1114 = vmul.f32 %v1049, %v1049
        %v1115 = vmul.f32 %v1050, %v1050
        %v1116 = vmul.f32 %v1051, %v1051
        %v1117 = vmul.f32 %v1052, %v1052
        %v1118 = vmul.f32 %v1053, %v1053
        %v1119 = vmul.f32 %v1054, %v1054
        %v1120 = vmul.f32 %v1055, %v1055
        %v1121 = vmul.f32 %v1056, %v1056
        %v1122 = vmul.f32 %v1057, %v1057
        %v1123 = vmul.f32 %v1058, %v1058
        %v1124 = vmul.f32 %v1059, %v1059
        %v1125 = vmul.f32 %v1060, %v1060
        %v1126 = vmul.f32 %v1061, %v1061
        %v1127 = vmul.f32 %v1062, %v1062
        %v1128 = vmul.f32 %v1063, %v1063
        %v1129 = vmul.f32 %v1064, %v1064
        %v1130 = vmul.f32 %v1065, %v1065
        %v1131 = vmul.f32 %v1066, %v1066
        %v1132 = vmul.f32 %v1067, %v1067
        %v1133 = vmul.f32 %v1068, %v1068
        %v1134 = vmul.f32 %v1069, %v1069
        %v1135 = vmul.f32 %v1070, %v1070
        %v1136 = vmul.f32 %v1071, %v1071
        %v1137 = vmul.f32 %v1072, %v1072
        %v1138 = vmul.f32 %v1073, %v1073
        %v1139 = vmul.f32 %v1074, %v1074
        %v1140 = vmul.f32 %v1075, %v1075
        %v1141 = vmul.f32 %v1076, %v1076
        %v1142 = vmul.f32 %v1077, %v1077
        %v1143 = vmul.f32 %v1078, %v1078
        %v1144 = vmul.f32 %v1079, %v1079
        %v1145 = vmul.f32 %v1080, %v1080
        %v1146 = vmul.f32 %v1081, %v1081
        %v1147 = vmul.f32 %v1082, %v1082
        %v1148 = vmul.f32 %v1083, %v1083
        %v1149 = vmul.f32 %v1084, %v1084
        %v1150 = vmul.f32 %v1085, %v1085
        %v1151 = vmul.f32 %v1086, %v1086
        %v1152 = vadd.f32 %v1088, %v1090
        %v1153 = vadd.f32 %v1152, %v1092
        %v1154 = vadd.f32 %v1153, %v1094
        %v1155 = vadd.f32 %v1154, %v1096
        %v1156 = vadd.f32 %v1155, %v1098
        %v1157 = vadd.f32 %v1156, %v1100
        %v1158 = vadd.f32 %v1157, %v1102
        %v1159 = vadd.f32 %v1158, %v1104
        %v1160 = vadd.f32 %v1159, %v1106
        %v1161 = vadd.f32 %v1160, %v1108
        %v1162 = vadd.f32 %v1161, %v1110
        %v1163 = vadd.f32 %v1162, %v1112
        %v1164 = vadd.f32 %v1163, %v1114
        %v1165 = vadd.f32 %v1164, %v1116
        %v1166 = vadd.f32 %v1165, %v1118
        %v1167 = vadd.f32 %v1166, %v1120
        %v1168 = vadd.f32 %v1167, %v1122
        %v1169 = vadd.f32 %v1168, %v1124
        %v1170 = vadd.f32 %v1169, %v1126
        %v1171 = vadd.f32 %v1170, %v1128
        %v1172 = vadd.f32 %v1171, %v1130
        %v1173 = vadd.f32 %v1172, %v1132
        %v1174 = vadd.f32 %v1173, %v1134
        %v1175 = vadd.f32 %v1174, %v1136
        %v1176 = vadd.f32 %v1175, %v1138
        %v1177 = vadd.f32 %v1176, %v1140
        %v1178 = vadd.f32 %v1177, %v1142
        %v1179 = vadd.f32 %v1178, %v1144
        %v1180 = vadd.f32 %v1179, %v1146
        %v1181 = vadd.f32 %v1180, %v1148
        %v1182 = vadd.f32 %v1181, %v1150
        %v1183 = vrot.slane %v1182, 4
        %v1184 = vadd.f32 %v1182, %v1183
        %v1185 = vrot.slane %v1184, 2
        %v1186 = vadd.f32 %v1184, %v1185
        %v1187 = vrot.slane %v1186, 1
        %v1188 = vadd.f32 %v1186, %v1187
        %v1189 = vadd.f32 %v1089, %v1091
        %v1190 = vadd.f32 %v1189, %v1093
        %v1191 = vadd.f32 %v1190, %v1095
        %v1192 = vadd.f32 %v1191, %v1097
        %v1193 = vadd.f32 %v1192, %v1099
        %v1194 = vadd.f32 %v1193, %v1101
        %v1195 = vadd.f32 %v1194, %v1103
        %v1196 = vadd.f32 %v1195, %v1105
        %v1197 = vadd.f32 %v1196, %v1107
        %v1198 = vadd.f32 %v1197, %v1109
        %v1199 = vadd.f32 %v1198, %v1111
        %v1200 = vadd.f32 %v1199, %v1113
        %v1201 = vadd.f32 %v1200, %v1115
        %v1202 = vadd.f32 %v1201, %v1117
        %v1203 = vadd.f32 %v1202, %v1119
        %v1204 = vadd.f32 %v1203, %v1121
        %v1205 = vadd.f32 %v1204, %v1123
        %v1206 = vadd.f32 %v1205, %v1125
        %v1207 = vadd.f32 %v1206, %v1127
        %v1208 = vadd.f32 %v1207, %v1129
        %v1209 = vadd.f32 %v1208, %v1131
        %v1210 = vadd.f32 %v1209, %v1133
        %v1211 = vadd.f32 %v1210, %v1135
        %v1212 = vadd.f32 %v1211, %v1137
        %v1213 = vadd.f32 %v1212, %v1139
        %v1214 = vadd.f32 %v1213, %v1141
        %v1215 = vadd.f32 %v1214, %v1143
        %v1216 = vadd.f32 %v1215, %v1145
        %v1217 = vadd.f32 %v1216, %v1147
        %v1218 = vadd.f32 %v1217, %v1149
        %v1219 = vadd.f32 %v1218, %v1151
        %v1220 = vrot.slane %v1219, 4
        %v1221 = vadd.f32 %v1219, %v1220
        %v1222 = vrot.slane %v1221, 2
        %v1223 = vadd.f32 %v1221, %v1222
        %v1224 = vrot.slane %v1223, 1
        %v1225 = vadd.f32 %v1223, %v1224
        %v1228 = vcombine.low %v1188, %v1225
        %v1230 = vunpack.c.l.s4 1966171168
        %v1231 = vunpack.c.0.s8 %v1230
        %v1232 = vlaneseq
        %v1233 = vshrl.u32 %v1232, 7
        %v1234 = vsub.s32 %v1231, %v1233
        %v1235 = vrot.slane %v1228, %v1234
        %v1237 = vunpack.c.l.s4 1966171168
        %v1238 = vunpack.c.0.s8 %v1237
        %v1239 = vlaneseq
        %v1240 = vshrl.u32 %v1239, 7
        %v1241 = vsub.s32 %v1238, %v1240
        %v1242 = vrot.slane %v1235, %v1241
        %v1244 = vadd.f32 %v1087, %v1242
        %v1245 = vlaneseq
        %vm1246 = vcmp.ge.s32.totalorder %v1245, 0
        %vm1247 = vcmp.lt.s32.totalorder %v1245, 256
        %vm1248 = vmand %vm1246, %vm1247
        %1249 = vst.msk [vmem:[#allocation2] sm:$0x3] %vm1248, %v1244
        // Predicated region
        $region49: #{tpu_custom_call.1} parent=35 // pred_check
          %p1250 = pneg %p309
        $region50: #{tpu_custom_call.1} parent=35 // pred_check_branch
          %1252 = sbr.rel (%p1250) target = $region52
        $region51: #{tpu_custom_call.1} parent=35 // pred_region
          %v1253 = vld [vmem:[#allocation2] sm:$0x3]
          %v1255 = vlaneseq
          %v1256 = vshrl.u32 %v1255, 7
          %v1257 = vsub.s32 0, %v1256
          %v1258 = vrot.slane %v1253, %v1257
          %v1259 = vlaneseq
          %v1260 = vshrl.u32 %v1259, 7
          %v1261 = vsub.s32 1, %v1260
          %v1262 = vrot.slane %v1253, %v1261
          %vm1265 = vcmask 1040384
          %v1266 = vsel %vm1265, %v1258, 0.0
          %v1267 = vsel %vm1265, %v1262, 0.0
          %v1268 = vadd.f32 %v1266, %v1267
          %1269 = vadd.xlane.f32.xlu0 %v1268
          %v1270 = vpop.xlane.xlu0 %1269
          %v1271 = vrot.slane %v1270, 4
          %v1272 = vadd.f32 %v1270, %v1271
          %v1273 = vrot.slane %v1272, 2
          %v1274 = vadd.f32 %v1272, %v1273
          %v1275 = vrot.slane %v1274, 1
          %v1276 = vadd.f32 %v1274, %v1275
          %s1277 = vtos %v1276
          %v1278 = vstv %s1277
          %v1279 = vmul.f32 %v1278, 7.6293945e-06
          %vm1280 = vcmask 0
          %1281 = vst.msk [vmem:[%s307] sm:$0x1] %vm1280, %v1279
        $region52: #{tpu_custom_call.1} parent=35 // pred_fallthru
          _
        %p1282 = scmp.lt.s32.totalorder %s24, 1
        %s1283 = scalar_select %p1282, %s24, 1
        %p1284 = scmp.lt.s32.totalorder %s25, 0
        %s1285 = scalar_select %p1284, %s25, 0
        %s1286 = sadd.s32 %s1285, %s1283
        %s1287 = scalar_lea.vmem %s4, %s1286
        // Predicated region
        $region53: #{tpu_custom_call.1} parent=35 // pred_check
          %p1288 = pneg %p160
        $region54: #{tpu_custom_call.1} parent=35 // pred_check_branch
          %1290 = sbr.rel (%p1288) target = $region56
        $region55: #{tpu_custom_call.1} parent=35 // pred_region
          _
        $region56: #{tpu_custom_call.1} parent=35 // pred_fallthru
          _
      $region36: #{tpu_custom_call.1} parent=5 // pred_fallthru
        _
      %p1291 = scmp.le.s32.totalorder 2, %s14
      // Predicated region
      $region57: #{tpu_custom_call.1} parent=5 // pred_check
        %p1292 = pneg %p1291
      $region58: #{tpu_custom_call.1} parent=5 // pred_check_branch
        %1294 = sbr.rel (%p1292) target = $region60
      $region59: #{tpu_custom_call.1} parent=5 // pred_region
        %s1295 = ssub.s32 %s14, 2
        // Predicated region
        $region61: #{tpu_custom_call.1} parent=59 // pred_check
          %p1296 = pneg %p166
        $region62: #{tpu_custom_call.1} parent=59 // pred_check_branch
          %1298 = sbr.rel (%p1296) target = $region64
        $region63: #{tpu_custom_call.1} parent=59 // pred_region
          %p1299 = scmp.lt.s32.totalorder %s27, 1
          %s1300 = scalar_select %p1299, %s27, 1
          %p1301 = scmp.lt.s32.totalorder %s28, 0
          %s1302 = scalar_select %p1301, %s28, 0
          %s1303 = sadd.s32 %s1302, %s1300
          %s1304 = scalar_lea.vmem %s4, %s1303
        $region64: #{tpu_custom_call.1} parent=59 // pred_fallthru
          _
      $region60: #{tpu_custom_call.1} parent=5 // pred_fallthru
        _
    $region6: #{tpu_custom_call.1} parent=1 // loop_footer
      %s18 = sadd.s32 1, %s14
    $region7: #{tpu_custom_call.1} parent=1 // loop_footer_branch
      %13 = sbr.rel target = $region3
    $region8: #{tpu_custom_call.1} parent=1 // loop_exit
      _
    %1305 = vsyncpa [#allocation4], 1
    %s1306 = scalar_lea.sflag [#allocation4], 1
    %1307 = vsyncpa %s1306, 1
    %1308 = vsyncpa [#allocation6], 1
    %s1309 = scalar_lea.sflag [#allocation6], 1
    %1310 = vsyncpa %s1309, 1

</llo_original>
